<compile_context>
chip_gen: v7x
topology: tpu7x:2x2x1
jax: 0.10.0
libtpu: 0.0.40
codegen_flags: <defaults>
</compile_context>

<pallas_src>
import functools
import numpy as np
import jax
import jax.numpy as jnp
from jax.experimental import pallas as pl
from jax.experimental.pallas import tpu as pltpu


def _round_up(a, b):
    return ((a + b - 1) // b) * b


# ----------------------------- Pallas kernel ---------------------------------
def char_cnn_kernel(L2, L4, B, E,
                    xb_ref, w1_ref, b1_ref, w2_ref, b2_ref,
                    wd1_ref, bd1_ref, wd2_ref, bd2_ref, o_ref):
    f32 = jnp.float32
    n1 = L2 * B
    n2 = L4 * B

    xb = xb_ref[...]                                        # (B, L*E) time-major flattened rows

    # ---- conv1 im2col built in-kernel: window at time s = lanes [s*E, s*E+3E) ----
    # Rows grouped as [even-phase windows | odd-phase windows] so maxpool1 is one VPU max.
    starts1 = [2 * u for u in range(L2)] + [2 * u + 1 for u in range(L2)]
    cc1 = jnp.concatenate([xb[:, s * E:(s + 3) * E] for s in starts1], axis=0)   # (2*L2*B, 3E)
    z1 = jnp.dot(cc1, w1_ref[...], preferred_element_type=f32)                   # (2*L2*B, 64)

    # ---- maxpool1 (k=2,s=2) BEFORE bias+tanh (exact: both commute with max) ----
    p1 = jnp.tanh(jnp.maximum(z1[:n1, :], z1[n1:, :]) + b1_ref[...])             # (L2*B, 64)
    # drop1: inference-mode identity

    # ---- conv2 im2col: 2*L4 windows of 3 consecutive pool1 steps (8-aligned row slices) ----
    def t(j):                                               # pool1 step j -> rows j*B:(j+1)*B
        return p1[j * B:(j + 1) * B, :]

    starts2 = [2 * u for u in range(L4)] + [2 * u + 1 for u in range(L4)]
    cc2 = jnp.concatenate(
        [jnp.concatenate([t(s), t(s + 1), t(s + 2)], axis=-1) for s in starts2],
        axis=0)                                                                   # (2*L4*B, 192)
    z2 = jnp.dot(cc2, w2_ref[...], preferred_element_type=f32)                    # (2*L4*B, 32)

    # ---- maxpool2 before bias+tanh ----
    p2 = jnp.tanh(jnp.maximum(z2[:n2, :], z2[n2:, :]) + b2_ref[...])              # (L4*B, 32)
    # drop2: inference-mode identity

    # ---- flatten (time-major; torch channel-major order folded into wd1) + dense1 + tanh ----
    flat = jnp.concatenate([p2[u * B:(u + 1) * B, :] for u in range(L4)], axis=-1)  # (B, L4*32)
    hd = jnp.tanh(jnp.dot(flat, wd1_ref[...], preferred_element_type=f32) + bd1_ref[...])

    # ---- dense2 (padded to 128 lanes -> lane-dense store) + softmax(dim=1) ----
    logits = jnp.dot(hd, wd2_ref[...], preferred_element_type=f32) + bd2_ref[...]   # (B, 128)
    mx = jnp.max(logits, axis=-1, keepdims=True)
    e = jnp.exp(logits - mx)
    o_ref[...] = e / jnp.sum(e, axis=-1, keepdims=True)


# ------------------------------ wrapper (glue) --------------------------------
def char_cnn_forward(x_ncl, params, block_b=128):
    N, E, L = x_ncl.shape
    L1 = L - 2
    L2 = L1 // 2
    L3 = L2 - 2
    L4 = L3 // 2                                             # == self.final_length
    C1, C2, H, O, OP = 64, 32, 100, 2, 128

    # batch block: multiple of 8 (sublane alignment), capped at block_b
    B = min(block_b, _round_up(N, 8))
    B = max(8, (B // 8) * 8)
    N_pad = _round_up(N, B)
    grid = N_pad // B

    # -------- layout plumbing (plain JAX, outside the kernel) --------
    # NCL -> per-sample time-major flattened row (L*E lanes, multiple of 128 -> lane-dense)
    x = jnp.transpose(x_ncl, (0, 2, 1)).astype(jnp.float32).reshape(N, L * E)
    if N_pad != N:
        x = jnp.pad(x, ((0, N_pad - N), (0, 0)))

    w1 = jnp.transpose(params["conv1_w"], (2, 1, 0)).reshape(3 * E, C1).astype(jnp.float32)
    b1 = params["conv1_b"].reshape(1, C1).astype(jnp.float32)
    w2 = jnp.transpose(params["conv2_w"], (2, 1, 0)).reshape(3 * C1, C2).astype(jnp.float32)
    b2 = params["conv2_b"].reshape(1, C2).astype(jnp.float32)
    # dense1 weight: torch flatten order (channel-major c*L4+t) -> time-major rows (t*32 + c)
    wd1 = jnp.transpose(params["dense1_w"].reshape(H, C2, L4),
                        (2, 1, 0)).reshape(L4 * C2, H).astype(jnp.float32)
    bd1 = params["dense1_b"].reshape(1, H).astype(jnp.float32)
    # dense2 padded to 128 output lanes; pad columns get -1e30 bias -> softmax prob 0
    wd2 = jnp.pad(jnp.transpose(params["dense2_w"], (1, 0)).astype(jnp.float32),
                  ((0, 0), (0, OP - O)))
    bd2 = jnp.concatenate([params["dense2_b"].reshape(1, O).astype(jnp.float32),
                           jnp.full((1, OP - O), -1e30, jnp.float32)], axis=-1)

    def full(shape):
        zeros = (0,) * len(shape)
        return pl.BlockSpec(shape, lambda i, z=zeros: z)

    kernel = functools.partial(char_cnn_kernel, L2, L4, B, E)

    out = pl.pallas_call(
        kernel,
        out_shape=jax.ShapeDtypeStruct((N_pad, OP), jnp.float32),
        grid=(grid,),
        in_specs=[
            pl.BlockSpec((B, L * E), lambda i: (i, 0)),      # one lane-dense batch block
            full((3 * E, C1)), full((1, C1)),
            full((3 * C1, C2)), full((1, C2)),
            full((L4 * C2, H)), full((1, H)),
            full((H, OP)), full((1, OP)),
        ],
        out_specs=pl.BlockSpec((B, OP), lambda i: (i, 0)),
        compiler_params=pltpu.CompilerParams(
            dimension_semantics=("parallel",),
            vmem_limit_bytes=32 * 1024 * 1024),
    )(x, w1, b1, w2, b2, wd1, bd1, wd2, bd2)
    return out[:N, :O]                                       # (N, 2) softmax probs


# ------------------------------ numpy reference --------------------------------
def _conv1d_np(x, W, b):
    Nn, Cin, Lx = x.shape
    Cout, _, K = W.shape
    Lo = Lx - K + 1
    out = np.zeros((Nn, Cout, Lo), np.float32)
    for k in range(K):
        out += np.einsum("nct,oc->not", x[:, :, k:k + Lo], W[:, :, k])
    return out + b[None, :, None]


def _maxpool1d_np(x):
    Nn, C, Lx = x.shape
    P = Lx // 2
    return x[:, :, :2 * P].reshape(Nn, C, P, 2).max(axis=3)


def reference_np(x, p):
    h = np.tanh(_conv1d_np(x, p["conv1_w"], p["conv1_b"]))
    h = _maxpool1d_np(h)
    h = np.tanh(_conv1d_np(h, p["conv2_w"], p["conv2_b"]))
    h = _maxpool1d_np(h)
    flat = h.reshape(h.shape[0], -1)                          # torch.flatten(start_dim=1)
    hd = np.tanh(flat @ p["dense1_w"].T + p["dense1_b"])
    logits = hd @ p["dense2_w"].T + p["dense2_b"]
    e = np.exp(logits - logits.max(axis=1, keepdims=True))
    return e / e.sum(axis=1, keepdims=True)


# ----------------------------------- main --------------------------------------
if __name__ == "__main__":
    # small shapes consistent with charCNN(input_length=32, embedding_size=16)
    N, E, L = 2, 16, 32
    L4 = ((L - 2) // 2 - 2) // 2                              # final_length = 6

    key = jax.random.PRNGKey(0)
    ks = jax.random.split(key, 10)
    params = {
        "conv1_w":  0.10 * jax.random.normal(ks[0], (64, E, 3), jnp.float32),
        "conv1_b":  0.10 * jax.random.normal(ks[1], (64,), jnp.float32),
        "conv2_w":  0.10 * jax.random.normal(ks[2], (32, 64, 3), jnp.float32),
        "conv2_b":  0.10 * jax.random.normal(ks[3], (32,), jnp.float32),
        "dense1_w": 0.05 * jax.random.normal(ks[4], (100, 32 * L4), jnp.float32),
        "dense1_b": 0.05 * jax.random.normal(ks[5], (100,), jnp.float32),
        "dense2_w": 0.05 * jax.random.normal(ks[6], (2, 100), jnp.float32),
        "dense2_b": 0.05 * jax.random.normal(ks[7], (2,), jnp.float32),
    }
    x = jax.random.normal(ks[8], (N, E, L), jnp.float32)      # PyTorch NCL layout

    out = jax.block_until_ready(char_cnn_forward(x, params))

    ref = reference_np(np.asarray(x), {k: np.asarray(v) for k, v in params.items()})
    # default (bf16-pass) MXU precision -> slightly looser tolerance than f32-exact
    np.testing.assert_allclose(np.asarray(out), ref, rtol=1e-2, atol=1e-2)

    print("KERNEL_OK")
</pallas_src>

<mosaic_0001>
module attributes {stable_mosaic.version = 11 : i64} {
  func.func @char_cnn_kernel(%arg0: i32, %arg1: memref<8x512xf32, #tpu.memory_space<vmem>>, %arg2: memref<48x64xf32, #tpu.memory_space<vmem>>, %arg3: memref<1x64xf32, #tpu.memory_space<vmem>>, %arg4: memref<192x32xf32, #tpu.memory_space<vmem>>, %arg5: memref<1x32xf32, #tpu.memory_space<vmem>>, %arg6: memref<192x100xf32, #tpu.memory_space<vmem>>, %arg7: memref<1x100xf32, #tpu.memory_space<vmem>>, %arg8: memref<100x128xf32, #tpu.memory_space<vmem>>, %arg9: memref<1x128xf32, #tpu.memory_space<vmem>>, %arg10: memref<8x128xf32, #tpu.memory_space<vmem>>) attributes {dimension_semantics = [#tpu.dimension_semantics<parallel>], iteration_bounds = array<i64: 1>, scalar_prefetch = 0 : i64, scratch_operands = 0 : i64, tpu.core_type = #tpu.core_type<tc>, window_params = [{transform_indices = @transform_0, window_bounds = array<i64: 8, 512>}, {pipeline_mode = #tpu.pipeline_mode<synchronous>, transform_indices = @transform_1, window_bounds = array<i64: 48, 64>}, {pipeline_mode = #tpu.pipeline_mode<synchronous>, transform_indices = @transform_2, window_bounds = array<i64: 1, 64>}, {pipeline_mode = #tpu.pipeline_mode<synchronous>, transform_indices = @transform_3, window_bounds = array<i64: 192, 32>}, {pipeline_mode = #tpu.pipeline_mode<synchronous>, transform_indices = @transform_4, window_bounds = array<i64: 1, 32>}, {pipeline_mode = #tpu.pipeline_mode<synchronous>, transform_indices = @transform_5, window_bounds = array<i64: 192, 100>}, {pipeline_mode = #tpu.pipeline_mode<synchronous>, transform_indices = @transform_6, window_bounds = array<i64: 1, 100>}, {pipeline_mode = #tpu.pipeline_mode<synchronous>, transform_indices = @transform_7, window_bounds = array<i64: 100, 128>}, {pipeline_mode = #tpu.pipeline_mode<synchronous>, transform_indices = @transform_8, window_bounds = array<i64: 1, 128>}, {transform_indices = @transform_9, window_bounds = array<i64: 8, 128>}]} {
    %c0 = arith.constant 0 : index
    %c0_0 = arith.constant 0 : index
    %0 = vector.load %arg1[%c0, %c0_0] : memref<8x512xf32, #tpu.memory_space<vmem>>, vector<8x512xf32>
    %1 = vector.extract_strided_slice %0 {offsets = [0, 0], sizes = [8, 48], strides = [1, 1]} : vector<8x512xf32> to vector<8x48xf32>
    %2 = vector.extract_strided_slice %0 {offsets = [0, 32], sizes = [8, 48], strides = [1, 1]} : vector<8x512xf32> to vector<8x48xf32>
    %3 = vector.extract_strided_slice %0 {offsets = [0, 64], sizes = [8, 48], strides = [1, 1]} : vector<8x512xf32> to vector<8x48xf32>
    %4 = vector.extract_strided_slice %0 {offsets = [0, 96], sizes = [8, 48], strides = [1, 1]} : vector<8x512xf32> to vector<8x48xf32>
    %5 = vector.extract_strided_slice %0 {offsets = [0, 128], sizes = [8, 48], strides = [1, 1]} : vector<8x512xf32> to vector<8x48xf32>
    %6 = vector.extract_strided_slice %0 {offsets = [0, 160], sizes = [8, 48], strides = [1, 1]} : vector<8x512xf32> to vector<8x48xf32>
    %7 = vector.extract_strided_slice %0 {offsets = [0, 192], sizes = [8, 48], strides = [1, 1]} : vector<8x512xf32> to vector<8x48xf32>
    %8 = vector.extract_strided_slice %0 {offsets = [0, 224], sizes = [8, 48], strides = [1, 1]} : vector<8x512xf32> to vector<8x48xf32>
    %9 = vector.extract_strided_slice %0 {offsets = [0, 256], sizes = [8, 48], strides = [1, 1]} : vector<8x512xf32> to vector<8x48xf32>
    %10 = vector.extract_strided_slice %0 {offsets = [0, 288], sizes = [8, 48], strides = [1, 1]} : vector<8x512xf32> to vector<8x48xf32>
    %11 = vector.extract_strided_slice %0 {offsets = [0, 320], sizes = [8, 48], strides = [1, 1]} : vector<8x512xf32> to vector<8x48xf32>
    %12 = vector.extract_strided_slice %0 {offsets = [0, 352], sizes = [8, 48], strides = [1, 1]} : vector<8x512xf32> to vector<8x48xf32>
    %13 = vector.extract_strided_slice %0 {offsets = [0, 384], sizes = [8, 48], strides = [1, 1]} : vector<8x512xf32> to vector<8x48xf32>
    %14 = vector.extract_strided_slice %0 {offsets = [0, 416], sizes = [8, 48], strides = [1, 1]} : vector<8x512xf32> to vector<8x48xf32>
    %15 = vector.extract_strided_slice %0 {offsets = [0, 448], sizes = [8, 48], strides = [1, 1]} : vector<8x512xf32> to vector<8x48xf32>
    %16 = vector.extract_strided_slice %0 {offsets = [0, 16], sizes = [8, 48], strides = [1, 1]} : vector<8x512xf32> to vector<8x48xf32>
    %17 = vector.extract_strided_slice %0 {offsets = [0, 48], sizes = [8, 48], strides = [1, 1]} : vector<8x512xf32> to vector<8x48xf32>
    %18 = vector.extract_strided_slice %0 {offsets = [0, 80], sizes = [8, 48], strides = [1, 1]} : vector<8x512xf32> to vector<8x48xf32>
    %19 = vector.extract_strided_slice %0 {offsets = [0, 112], sizes = [8, 48], strides = [1, 1]} : vector<8x512xf32> to vector<8x48xf32>
    %20 = vector.extract_strided_slice %0 {offsets = [0, 144], sizes = [8, 48], strides = [1, 1]} : vector<8x512xf32> to vector<8x48xf32>
    %21 = vector.extract_strided_slice %0 {offsets = [0, 176], sizes = [8, 48], strides = [1, 1]} : vector<8x512xf32> to vector<8x48xf32>
    %22 = vector.extract_strided_slice %0 {offsets = [0, 208], sizes = [8, 48], strides = [1, 1]} : vector<8x512xf32> to vector<8x48xf32>
    %23 = vector.extract_strided_slice %0 {offsets = [0, 240], sizes = [8, 48], strides = [1, 1]} : vector<8x512xf32> to vector<8x48xf32>
    %24 = vector.extract_strided_slice %0 {offsets = [0, 272], sizes = [8, 48], strides = [1, 1]} : vector<8x512xf32> to vector<8x48xf32>
    %25 = vector.extract_strided_slice %0 {offsets = [0, 304], sizes = [8, 48], strides = [1, 1]} : vector<8x512xf32> to vector<8x48xf32>
    %26 = vector.extract_strided_slice %0 {offsets = [0, 336], sizes = [8, 48], strides = [1, 1]} : vector<8x512xf32> to vector<8x48xf32>
    %27 = vector.extract_strided_slice %0 {offsets = [0, 368], sizes = [8, 48], strides = [1, 1]} : vector<8x512xf32> to vector<8x48xf32>
    %28 = vector.extract_strided_slice %0 {offsets = [0, 400], sizes = [8, 48], strides = [1, 1]} : vector<8x512xf32> to vector<8x48xf32>
    %29 = vector.extract_strided_slice %0 {offsets = [0, 432], sizes = [8, 48], strides = [1, 1]} : vector<8x512xf32> to vector<8x48xf32>
    %30 = vector.extract_strided_slice %0 {offsets = [0, 464], sizes = [8, 48], strides = [1, 1]} : vector<8x512xf32> to vector<8x48xf32>
    %31 = tpu.concatenate %1, %2, %3, %4, %5, %6, %7, %8, %9, %10, %11, %12, %13, %14, %15, %16 in 0 : vector<8x48xf32>, vector<8x48xf32>, vector<8x48xf32>, vector<8x48xf32>, vector<8x48xf32>, vector<8x48xf32>, vector<8x48xf32>, vector<8x48xf32>, vector<8x48xf32>, vector<8x48xf32>, vector<8x48xf32>, vector<8x48xf32>, vector<8x48xf32>, vector<8x48xf32>, vector<8x48xf32>, vector<8x48xf32> -> vector<128x48xf32>
    %32 = tpu.concatenate %17, %18, %19, %20, %21, %22, %23, %24, %25, %26, %27, %28, %29, %30 in 0 : vector<8x48xf32>, vector<8x48xf32>, vector<8x48xf32>, vector<8x48xf32>, vector<8x48xf32>, vector<8x48xf32>, vector<8x48xf32>, vector<8x48xf32>, vector<8x48xf32>, vector<8x48xf32>, vector<8x48xf32>, vector<8x48xf32>, vector<8x48xf32>, vector<8x48xf32> -> vector<112x48xf32>
    %33 = tpu.concatenate %31, %32 in 0 : vector<128x48xf32>, vector<112x48xf32> -> vector<240x48xf32>
    %c0_1 = arith.constant 0 : index
    %c0_2 = arith.constant 0 : index
    %34 = vector.load %arg2[%c0_1, %c0_2] : memref<48x64xf32, #tpu.memory_space<vmem>>, vector<48x64xf32>
    %cst = arith.constant dense<0.000000e+00> : vector<240x64xf32>
    %35 = tpu.matmul %33, %34, %cst {dimension_numbers = #tpu.dot_dimension_numbers<[1], [0], [0], [1], [0, 0, 1, 1], [], []>} : vector<240x48xf32>, vector<48x64xf32>, vector<240x64xf32> -> vector<240x64xf32>
    %36 = vector.extract_strided_slice %35 {offsets = [0, 0], sizes = [120, 64], strides = [1, 1]} : vector<240x64xf32> to vector<120x64xf32>
    %37 = vector.extract_strided_slice %35 {offsets = [120, 0], sizes = [120, 64], strides = [1, 1]} : vector<240x64xf32> to vector<120x64xf32>
    %38 = arith.maximumf %36, %37 : vector<120x64xf32>
    %c0_3 = arith.constant 0 : index
    %c0_4 = arith.constant 0 : index
    %39 = vector.load %arg3[%c0_3, %c0_4] : memref<1x64xf32, #tpu.memory_space<vmem>>, vector<1x64xf32>
    %40 = vector.broadcast %39 : vector<1x64xf32> to vector<120x64xf32>
    %41 = arith.addf %38, %40 : vector<120x64xf32>
    %42 = math.tanh %41 : vector<120x64xf32>
    %43 = vector.extract_strided_slice %42 {offsets = [0, 0], sizes = [8, 64], strides = [1, 1]} : vector<120x64xf32> to vector<8x64xf32>
    %44 = vector.extract_strided_slice %42 {offsets = [8, 0], sizes = [8, 64], strides = [1, 1]} : vector<120x64xf32> to vector<8x64xf32>
    %45 = vector.extract_strided_slice %42 {offsets = [16, 0], sizes = [8, 64], strides = [1, 1]} : vector<120x64xf32> to vector<8x64xf32>
    %46 = tpu.concatenate %43, %44, %45 in 1 : vector<8x64xf32>, vector<8x64xf32>, vector<8x64xf32> -> vector<8x192xf32>
    %47 = vector.extract_strided_slice %42 {offsets = [16, 0], sizes = [8, 64], strides = [1, 1]} : vector<120x64xf32> to vector<8x64xf32>
    %48 = vector.extract_strided_slice %42 {offsets = [24, 0], sizes = [8, 64], strides = [1, 1]} : vector<120x64xf32> to vector<8x64xf32>
    %49 = vector.extract_strided_slice %42 {offsets = [32, 0], sizes = [8, 64], strides = [1, 1]} : vector<120x64xf32> to vector<8x64xf32>
    %50 = tpu.concatenate %47, %48, %49 in 1 : vector<8x64xf32>, vector<8x64xf32>, vector<8x64xf32> -> vector<8x192xf32>
    %51 = vector.extract_strided_slice %42 {offsets = [32, 0], sizes = [8, 64], strides = [1, 1]} : vector<120x64xf32> to vector<8x64xf32>
    %52 = vector.extract_strided_slice %42 {offsets = [40, 0], sizes = [8, 64], strides = [1, 1]} : vector<120x64xf32> to vector<8x64xf32>
    %53 = vector.extract_strided_slice %42 {offsets = [48, 0], sizes = [8, 64], strides = [1, 1]} : vector<120x64xf32> to vector<8x64xf32>
    %54 = tpu.concatenate %51, %52, %53 in 1 : vector<8x64xf32>, vector<8x64xf32>, vector<8x64xf32> -> vector<8x192xf32>
    %55 = vector.extract_strided_slice %42 {offsets = [48, 0], sizes = [8, 64], strides = [1, 1]} : vector<120x64xf32> to vector<8x64xf32>
    %56 = vector.extract_strided_slice %42 {offsets = [56, 0], sizes = [8, 64], strides = [1, 1]} : vector<120x64xf32> to vector<8x64xf32>
    %57 = vector.extract_strided_slice %42 {offsets = [64, 0], sizes = [8, 64], strides = [1, 1]} : vector<120x64xf32> to vector<8x64xf32>
    %58 = tpu.concatenate %55, %56, %57 in 1 : vector<8x64xf32>, vector<8x64xf32>, vector<8x64xf32> -> vector<8x192xf32>
    %59 = vector.extract_strided_slice %42 {offsets = [64, 0], sizes = [8, 64], strides = [1, 1]} : vector<120x64xf32> to vector<8x64xf32>
    %60 = vector.extract_strided_slice %42 {offsets = [72, 0], sizes = [8, 64], strides = [1, 1]} : vector<120x64xf32> to vector<8x64xf32>
    %61 = vector.extract_strided_slice %42 {offsets = [80, 0], sizes = [8, 64], strides = [1, 1]} : vector<120x64xf32> to vector<8x64xf32>
    %62 = tpu.concatenate %59, %60, %61 in 1 : vector<8x64xf32>, vector<8x64xf32>, vector<8x64xf32> -> vector<8x192xf32>
    %63 = vector.extract_strided_slice %42 {offsets = [80, 0], sizes = [8, 64], strides = [1, 1]} : vector<120x64xf32> to vector<8x64xf32>
    %64 = vector.extract_strided_slice %42 {offsets = [88, 0], sizes = [8, 64], strides = [1, 1]} : vector<120x64xf32> to vector<8x64xf32>
    %65 = vector.extract_strided_slice %42 {offsets = [96, 0], sizes = [8, 64], strides = [1, 1]} : vector<120x64xf32> to vector<8x64xf32>
    %66 = tpu.concatenate %63, %64, %65 in 1 : vector<8x64xf32>, vector<8x64xf32>, vector<8x64xf32> -> vector<8x192xf32>
    %67 = vector.extract_strided_slice %42 {offsets = [8, 0], sizes = [8, 64], strides = [1, 1]} : vector<120x64xf32> to vector<8x64xf32>
    %68 = vector.extract_strided_slice %42 {offsets = [16, 0], sizes = [8, 64], strides = [1, 1]} : vector<120x64xf32> to vector<8x64xf32>
    %69 = vector.extract_strided_slice %42 {offsets = [24, 0], sizes = [8, 64], strides = [1, 1]} : vector<120x64xf32> to vector<8x64xf32>
    %70 = tpu.concatenate %67, %68, %69 in 1 : vector<8x64xf32>, vector<8x64xf32>, vector<8x64xf32> -> vector<8x192xf32>
    %71 = vector.extract_strided_slice %42 {offsets = [24, 0], sizes = [8, 64], strides = [1, 1]} : vector<120x64xf32> to vector<8x64xf32>
    %72 = vector.extract_strided_slice %42 {offsets = [32, 0], sizes = [8, 64], strides = [1, 1]} : vector<120x64xf32> to vector<8x64xf32>
    %73 = vector.extract_strided_slice %42 {offsets = [40, 0], sizes = [8, 64], strides = [1, 1]} : vector<120x64xf32> to vector<8x64xf32>
    %74 = tpu.concatenate %71, %72, %73 in 1 : vector<8x64xf32>, vector<8x64xf32>, vector<8x64xf32> -> vector<8x192xf32>
    %75 = vector.extract_strided_slice %42 {offsets = [40, 0], sizes = [8, 64], strides = [1, 1]} : vector<120x64xf32> to vector<8x64xf32>
    %76 = vector.extract_strided_slice %42 {offsets = [48, 0], sizes = [8, 64], strides = [1, 1]} : vector<120x64xf32> to vector<8x64xf32>
    %77 = vector.extract_strided_slice %42 {offsets = [56, 0], sizes = [8, 64], strides = [1, 1]} : vector<120x64xf32> to vector<8x64xf32>
    %78 = tpu.concatenate %75, %76, %77 in 1 : vector<8x64xf32>, vector<8x64xf32>, vector<8x64xf32> -> vector<8x192xf32>
    %79 = vector.extract_strided_slice %42 {offsets = [56, 0], sizes = [8, 64], strides = [1, 1]} : vector<120x64xf32> to vector<8x64xf32>
    %80 = vector.extract_strided_slice %42 {offsets = [64, 0], sizes = [8, 64], strides = [1, 1]} : vector<120x64xf32> to vector<8x64xf32>
    %81 = vector.extract_strided_slice %42 {offsets = [72, 0], sizes = [8, 64], strides = [1, 1]} : vector<120x64xf32> to vector<8x64xf32>
    %82 = tpu.concatenate %79, %80, %81 in 1 : vector<8x64xf32>, vector<8x64xf32>, vector<8x64xf32> -> vector<8x192xf32>
    %83 = vector.extract_strided_slice %42 {offsets = [72, 0], sizes = [8, 64], strides = [1, 1]} : vector<120x64xf32> to vector<8x64xf32>
    %84 = vector.extract_strided_slice %42 {offsets = [80, 0], sizes = [8, 64], strides = [1, 1]} : vector<120x64xf32> to vector<8x64xf32>
    %85 = vector.extract_strided_slice %42 {offsets = [88, 0], sizes = [8, 64], strides = [1, 1]} : vector<120x64xf32> to vector<8x64xf32>
    %86 = tpu.concatenate %83, %84, %85 in 1 : vector<8x64xf32>, vector<8x64xf32>, vector<8x64xf32> -> vector<8x192xf32>
    %87 = vector.extract_strided_slice %42 {offsets = [88, 0], sizes = [8, 64], strides = [1, 1]} : vector<120x64xf32> to vector<8x64xf32>
    %88 = vector.extract_strided_slice %42 {offsets = [96, 0], sizes = [8, 64], strides = [1, 1]} : vector<120x64xf32> to vector<8x64xf32>
    %89 = vector.extract_strided_slice %42 {offsets = [104, 0], sizes = [8, 64], strides = [1, 1]} : vector<120x64xf32> to vector<8x64xf32>
    %90 = tpu.concatenate %87, %88, %89 in 1 : vector<8x64xf32>, vector<8x64xf32>, vector<8x64xf32> -> vector<8x192xf32>
    %91 = tpu.concatenate %46, %50, %54, %58, %62, %66, %70, %74, %78, %82, %86, %90 in 0 : vector<8x192xf32>, vector<8x192xf32>, vector<8x192xf32>, vector<8x192xf32>, vector<8x192xf32>, vector<8x192xf32>, vector<8x192xf32>, vector<8x192xf32>, vector<8x192xf32>, vector<8x192xf32>, vector<8x192xf32>, vector<8x192xf32> -> vector<96x192xf32>
    %c0_5 = arith.constant 0 : index
    %c0_6 = arith.constant 0 : index
    %92 = vector.load %arg4[%c0_5, %c0_6] : memref<192x32xf32, #tpu.memory_space<vmem>>, vector<192x32xf32>
    %cst_7 = arith.constant dense<0.000000e+00> : vector<96x32xf32>
    %93 = tpu.matmul %91, %92, %cst_7 {dimension_numbers = #tpu.dot_dimension_numbers<[1], [0], [0], [1], [0, 0, 1, 1], [], []>} : vector<96x192xf32>, vector<192x32xf32>, vector<96x32xf32> -> vector<96x32xf32>
    %94 = vector.extract_strided_slice %93 {offsets = [0, 0], sizes = [48, 32], strides = [1, 1]} : vector<96x32xf32> to vector<48x32xf32>
    %95 = vector.extract_strided_slice %93 {offsets = [48, 0], sizes = [48, 32], strides = [1, 1]} : vector<96x32xf32> to vector<48x32xf32>
    %96 = arith.maximumf %94, %95 : vector<48x32xf32>
    %c0_8 = arith.constant 0 : index
    %c0_9 = arith.constant 0 : index
    %97 = vector.load %arg5[%c0_8, %c0_9] : memref<1x32xf32, #tpu.memory_space<vmem>>, vector<1x32xf32>
    %98 = vector.broadcast %97 : vector<1x32xf32> to vector<48x32xf32>
    %99 = arith.addf %96, %98 : vector<48x32xf32>
    %100 = math.tanh %99 : vector<48x32xf32>
    %101 = vector.extract_strided_slice %100 {offsets = [0, 0], sizes = [8, 32], strides = [1, 1]} : vector<48x32xf32> to vector<8x32xf32>
    %102 = vector.extract_strided_slice %100 {offsets = [8, 0], sizes = [8, 32], strides = [1, 1]} : vector<48x32xf32> to vector<8x32xf32>
    %103 = vector.extract_strided_slice %100 {offsets = [16, 0], sizes = [8, 32], strides = [1, 1]} : vector<48x32xf32> to vector<8x32xf32>
    %104 = vector.extract_strided_slice %100 {offsets = [24, 0], sizes = [8, 32], strides = [1, 1]} : vector<48x32xf32> to vector<8x32xf32>
    %105 = vector.extract_strided_slice %100 {offsets = [32, 0], sizes = [8, 32], strides = [1, 1]} : vector<48x32xf32> to vector<8x32xf32>
    %106 = vector.extract_strided_slice %100 {offsets = [40, 0], sizes = [8, 32], strides = [1, 1]} : vector<48x32xf32> to vector<8x32xf32>
    %107 = tpu.concatenate %101, %102, %103, %104, %105, %106 in 1 : vector<8x32xf32>, vector<8x32xf32>, vector<8x32xf32>, vector<8x32xf32>, vector<8x32xf32>, vector<8x32xf32> -> vector<8x192xf32>
    %c0_10 = arith.constant 0 : index
    %c0_11 = arith.constant 0 : index
    %108 = vector.load %arg6[%c0_10, %c0_11] : memref<192x100xf32, #tpu.memory_space<vmem>>, vector<192x100xf32>
    %cst_12 = arith.constant dense<0.000000e+00> : vector<8x100xf32>
    %109 = tpu.matmul %107, %108, %cst_12 {dimension_numbers = #tpu.dot_dimension_numbers<[1], [0], [0], [1], [0, 0, 1, 1], [], []>} : vector<8x192xf32>, vector<192x100xf32>, vector<8x100xf32> -> vector<8x100xf32>
    %c0_13 = arith.constant 0 : index
    %c0_14 = arith.constant 0 : index
    %110 = vector.load %arg7[%c0_13, %c0_14] : memref<1x100xf32, #tpu.memory_space<vmem>>, vector<1x100xf32>
    %111 = vector.broadcast %110 : vector<1x100xf32> to vector<8x100xf32>
    %112 = arith.addf %109, %111 : vector<8x100xf32>
    %113 = math.tanh %112 : vector<8x100xf32>
    %c0_15 = arith.constant 0 : index
    %c0_16 = arith.constant 0 : index
    %114 = vector.load %arg8[%c0_15, %c0_16] : memref<100x128xf32, #tpu.memory_space<vmem>>, vector<100x128xf32>
    %cst_17 = arith.constant dense<0.000000e+00> : vector<8x128xf32>
    %115 = tpu.matmul %113, %114, %cst_17 {dimension_numbers = #tpu.dot_dimension_numbers<[1], [0], [0], [1], [0, 0, 1, 1], [], []>} : vector<8x100xf32>, vector<100x128xf32>, vector<8x128xf32> -> vector<8x128xf32>
    %c0_18 = arith.constant 0 : index
    %c0_19 = arith.constant 0 : index
    %116 = vector.load %arg9[%c0_18, %c0_19] : memref<1x128xf32, #tpu.memory_space<vmem>>, vector<1x128xf32>
    %117 = vector.broadcast %116 : vector<1x128xf32> to vector<8x128xf32>
    %118 = arith.addf %115, %117 : vector<8x128xf32>
    %cst_20 = arith.constant dense<0xFF800000> : vector<8xf32>
    %119 = vector.multi_reduction <maximumf>, %118, %cst_20 [1] : vector<8x128xf32> to vector<8xf32>
    %120 = vector.shape_cast %119 : vector<8xf32> to vector<8x1xf32>
    %121 = vector.broadcast %120 : vector<8x1xf32> to vector<8x128xf32>
    %122 = arith.subf %118, %121 : vector<8x128xf32>
    %123 = math.exp %122 : vector<8x128xf32>
    %cst_21 = arith.constant dense<0.000000e+00> : vector<8xf32>
    %124 = vector.multi_reduction <add>, %123, %cst_21 [1] : vector<8x128xf32> to vector<8xf32>
    %125 = vector.shape_cast %124 : vector<8xf32> to vector<8x1xf32>
    %126 = vector.broadcast %125 : vector<8x1xf32> to vector<8x128xf32>
    %127 = arith.divf %123, %126 : vector<8x128xf32>
    %c0_22 = arith.constant 0 : index
    %c0_23 = arith.constant 0 : index
    %128 = vector.load %arg10[%c0_22, %c0_23] : memref<8x128xf32, #tpu.memory_space<vmem>>, vector<8x128xf32>
    tpu.vector_store %arg10[%c0_22, %c0_23], %127 {strides = array<i32>} : memref<8x128xf32, #tpu.memory_space<vmem>>, vector<8x128xf32>,
    return
  }
  func.func @transform_0(%arg0: i32) -> (i32, i32) {
    %c0_i32 = arith.constant 0 : i32
    %c0_i32_0 = arith.constant 0 : i32
    return %arg0, %c0_i32 : i32, i32
  }
  func.func @transform_1(%arg0: i32) -> (i32, i32) {
    %c0_i32 = arith.constant 0 : i32
    %c0_i32_0 = arith.constant 0 : i32
    %c0_i32_1 = arith.constant 0 : i32
    return %c0_i32, %c0_i32_0 : i32, i32
  }
  func.func @transform_2(%arg0: i32) -> (i32, i32) {
    %c0_i32 = arith.constant 0 : i32
    %c0_i32_0 = arith.constant 0 : i32
    %c0_i32_1 = arith.constant 0 : i32
    return %c0_i32, %c0_i32_0 : i32, i32
  }
  func.func @transform_3(%arg0: i32) -> (i32, i32) {
    %c0_i32 = arith.constant 0 : i32
    %c0_i32_0 = arith.constant 0 : i32
    %c0_i32_1 = arith.constant 0 : i32
    return %c0_i32, %c0_i32_0 : i32, i32
  }
  func.func @transform_4(%arg0: i32) -> (i32, i32) {
    %c0_i32 = arith.constant 0 : i32
    %c0_i32_0 = arith.constant 0 : i32
    %c0_i32_1 = arith.constant 0 : i32
    return %c0_i32, %c0_i32_0 : i32, i32
  }
  func.func @transform_5(%arg0: i32) -> (i32, i32) {
    %c0_i32 = arith.constant 0 : i32
    %c0_i32_0 = arith.constant 0 : i32
    %c0_i32_1 = arith.constant 0 : i32
    return %c0_i32, %c0_i32_0 : i32, i32
  }
  func.func @transform_6(%arg0: i32) -> (i32, i32) {
    %c0_i32 = arith.constant 0 : i32
    %c0_i32_0 = arith.constant 0 : i32
    %c0_i32_1 = arith.constant 0 : i32
    return %c0_i32, %c0_i32_0 : i32, i32
  }
  func.func @transform_7(%arg0: i32) -> (i32, i32) {
    %c0_i32 = arith.constant 0 : i32
    %c0_i32_0 = arith.constant 0 : i32
    %c0_i32_1 = arith.constant 0 : i32
    return %c0_i32, %c0_i32_0 : i32, i32
  }
  func.func @transform_8(%arg0: i32) -> (i32, i32) {
    %c0_i32 = arith.constant 0 : i32
    %c0_i32_0 = arith.constant 0 : i32
    %c0_i32_1 = arith.constant 0 : i32
    return %c0_i32, %c0_i32_0 : i32, i32
  }
  func.func @transform_9(%arg0: i32) -> (i32, i32) {
    %c0_i32 = arith.constant 0 : i32
    %c0_i32_0 = arith.constant 0 : i32
    return %arg0, %c0_i32 : i32, i32
  }
}

</mosaic_0001>

<llo_original>
// kernel: tpu_custom_call.1
$region0: #{tpu_custom_call.1}
  #allocation0 [shape = 'u32[]', space=smem, size = 0x4, offset = 0x4, fixed_abs, tag = 'smem constant byte address 0x4 - core index']
  #allocation1 [shape = 'u32[144,128]{1,0:T(1,128)}', space=vmem, size = 0x12000, scoped, tag = 'internal scratch']
  %s0 = inlined_call_operand.vmem [shape: f32[8,512], index: 0, kind: input, shape index: {}]
  %s1 = inlined_call_operand.vmem [shape: f32[48,64], index: 1, kind: input, shape index: {}]
  %s2 = inlined_call_operand.vmem [shape: f32[1,64], index: 2, kind: input, shape index: {}]
  %s3 = inlined_call_operand.vmem [shape: f32[192,32], index: 3, kind: input, shape index: {}]
  %s4 = inlined_call_operand.vmem [shape: f32[1,32], index: 4, kind: input, shape index: {}]
  %s5 = inlined_call_operand.vmem [shape: f32[192,100], index: 5, kind: input, shape index: {}]
  %s6 = inlined_call_operand.vmem [shape: f32[1,100], index: 6, kind: input, shape index: {}]
  %s7 = inlined_call_operand.hbm [shape: f32[100,128], index: 7, kind: input, shape index: {}]
  %s8 = inlined_call_operand.vmem [shape: f32[1,128], index: 8, kind: input, shape index: {}]
  %s9 = inlined_call_operand.hbm [shape: f32[8,128], index: 9, kind: output, shape index: {}]
  %s10 = sld [smem:[#allocation0]]
  $region50: #{tpu_custom_call.1} parent=0
    _
  %s12 = ssub.s32 1, %s10
  %s13 = scalar_select 0, %s12, %s10
  $region1: #{tpu_custom_call.1} parent=0
    #allocation2 [shape = 'u8[53248]{0}', space=vmem, size = 0xd000, scoped, tag = 'input window, operand 7, single buffered']
    #allocation3 [shape = 's32[1]{0}', space=sflag, size = 0x4, scoped, tag = 'scoped memory for tpu_custom_call.1']
    #allocation4 [shape = 's32[1]{0}', space=sflag, size = 0x4, scoped, tag = 'scoped memory for tpu_custom_call.1']
    #allocation5 [shape = 'u8[4096]{0}', space=vmem, size = 0x1000, scoped, tag = 'output window, operand 0, single buffered']
    %14 = vsyncpa [#allocation3], 0
    %15 = vsyncpa [#allocation4], 0
    // Predicated region
    $region2: #{tpu_custom_call.1} parent=1 // pred_check
      _
    $region3: #{tpu_custom_call.1} parent=1 // pred_check_branch
      %17 = sbr.rel (0) target = $region5
    $region4: #{tpu_custom_call.1} parent=1 // pred_region
      _
    $region5: #{tpu_custom_call.1} parent=1 // pred_fallthru
      _
    // Predicated region
    $region6: #{tpu_custom_call.1} parent=1 // pred_check
      _
    $region7: #{tpu_custom_call.1} parent=1 // pred_check_branch
      %19 = sbr.rel (0) target = $region9
    $region8: #{tpu_custom_call.1} parent=1 // pred_region
      _
    $region9: #{tpu_custom_call.1} parent=1 // pred_fallthru
      _
    // Predicated region
    $region10: #{tpu_custom_call.1} parent=1 // pred_check
      _
    $region11: #{tpu_custom_call.1} parent=1 // pred_check_branch
      %21 = sbr.rel (0) target = $region13
    $region12: #{tpu_custom_call.1} parent=1 // pred_region
      _
    $region13: #{tpu_custom_call.1} parent=1 // pred_fallthru
      _
    // Predicated region
    $region14: #{tpu_custom_call.1} parent=1 // pred_check
      _
    $region15: #{tpu_custom_call.1} parent=1 // pred_check_branch
      %23 = sbr.rel (0) target = $region17
    $region16: #{tpu_custom_call.1} parent=1 // pred_region
      _
    $region17: #{tpu_custom_call.1} parent=1 // pred_fallthru
      _
    // Predicated region
    $region18: #{tpu_custom_call.1} parent=1 // pred_check
      _
    $region19: #{tpu_custom_call.1} parent=1 // pred_check_branch
      %25 = sbr.rel (0) target = $region21
    $region20: #{tpu_custom_call.1} parent=1 // pred_region
      _
    $region21: #{tpu_custom_call.1} parent=1 // pred_fallthru
      _
    // Predicated region
    $region22: #{tpu_custom_call.1} parent=1 // pred_check
      _
    $region23: #{tpu_custom_call.1} parent=1 // pred_check_branch
      %27 = sbr.rel (0) target = $region25
    $region24: #{tpu_custom_call.1} parent=1 // pred_region
      _
    $region25: #{tpu_custom_call.1} parent=1 // pred_fallthru
      _
    // Predicated region
    $region26: #{tpu_custom_call.1} parent=1 // pred_check
      _
    $region27: #{tpu_custom_call.1} parent=1 // pred_check_branch
      %29 = sbr.rel (0) target = $region29
    $region28: #{tpu_custom_call.1} parent=1 // pred_region
      _
    $region29: #{tpu_custom_call.1} parent=1 // pred_fallthru
      _
    // Predicated region
    $region30: #{tpu_custom_call.1} parent=1 // pred_check
      _
    $region31: #{tpu_custom_call.1} parent=1 // pred_check_branch
      %31 = sbr.rel (0) target = $region33
    $region32: #{tpu_custom_call.1} parent=1 // pred_region
      %s33 = ssub.s32 1664, 1664
      %34 = vsyncadd [#allocation3], %s33
      %s35 = sshll.u32 [#allocation2], 4
      %s36 = int_to_ptr.vmem [resolvable:$true] %s35
      %41 = dma.hbm_to_vmem [thread:$0]  %s7, 1664, %s36, [#allocation3], 128, 128, 8
    $region33: #{tpu_custom_call.1} parent=1 // pred_fallthru
      _
    // Predicated region
    $region34: #{tpu_custom_call.1} parent=1 // pred_check
      _
    $region35: #{tpu_custom_call.1} parent=1 // pred_check_branch
      %43 = sbr.rel (0) target = $region37
    $region36: #{tpu_custom_call.1} parent=1 // pred_region
      _
    $region37: #{tpu_custom_call.1} parent=1 // pred_fallthru
      _
    // Predicated region
    $region38: #{tpu_custom_call.1} parent=1 // pred_check
      _
    $region39: #{tpu_custom_call.1} parent=1 // pred_check_branch
      %45 = sbr.rel (0) target = $region41
    $region40: #{tpu_custom_call.1} parent=1 // pred_region
      %46 = dma.done [#allocation3], 1664
    $region41: #{tpu_custom_call.1} parent=1 // pred_fallthru
      _
    %v47 = vld [vmem:[%s0] sm:$0xff]
    %v48 = vld [vmem:[%s0 + $0x8] sm:$0xff]
    %v49 = vld [vmem:[%s0 + $0x10] sm:$0xff]
    %v50 = vld [vmem:[%s0 + $0x18] sm:$0xff]
    %52 = vrot.lane.b32.xlu0 %v47, 96
    %v53 = vpop.permute.xlu0 %52
    %54 = vrot.lane.b32.xlu0 %v47, 64
    %v55 = vpop.permute.xlu0 %54
    %57 = vrot.lane.b32.xlu0 %v47, 32
    %v58 = vpop.permute.xlu0 %57
    %59 = vrot.lane.b32.xlu0 %v48, 32
    %v60 = vpop.permute.xlu0 %59
    %vm61 = vcmask 261120
    %v62 = vsel %vm61, %v58, %v60
    %63 = vrot.lane.b32.xlu0 %v48, 96
    %v64 = vpop.permute.xlu0 %63
    %65 = vrot.lane.b32.xlu0 %v48, 64
    %v66 = vpop.permute.xlu0 %65
    %68 = vrot.lane.b32.xlu0 %v49, 32
    %v69 = vpop.permute.xlu0 %68
    %v70 = vsel %vm61, %v60, %v69
    %71 = vrot.lane.b32.xlu0 %v49, 96
    %v72 = vpop.permute.xlu0 %71
    %73 = vrot.lane.b32.xlu0 %v49, 64
    %v74 = vpop.permute.xlu0 %73
    %76 = vrot.lane.b32.xlu0 %v50, 32
    %v77 = vpop.permute.xlu0 %76
    %v78 = vsel %vm61, %v69, %v77
    %79 = vrot.lane.b32.xlu0 %v50, 96
    %v80 = vpop.permute.xlu0 %79
    %81 = vrot.lane.b32.xlu0 %v50, 64
    %v82 = vpop.permute.xlu0 %81
    %83 = vrot.lane.b32.xlu0 %v47, 112
    %v84 = vpop.permute.xlu0 %83
    %vm85 = vcmask 523264
    %v86 = vsel %vm85, %v55, %v66
    %v87 = vsel %vm85, %v66, %v74
    %v88 = vsel %vm85, %v74, %v82
    %89 = vrot.lane.b32.xlu0 %v47, 80
    %v90 = vpop.permute.xlu0 %89
    %91 = vrot.lane.b32.xlu0 %v53, 80
    %v92 = vpop.permute.xlu0 %91
    %93 = vrot.lane.b32.xlu0 %v86, 80
    %v94 = vpop.permute.xlu0 %93
    %95 = vrot.lane.b32.xlu0 %v60, 80
    %v96 = vpop.permute.xlu0 %95
    %97 = vrot.lane.b32.xlu0 %v48, 80
    %v98 = vpop.permute.xlu0 %97
    %99 = vrot.lane.b32.xlu0 %v64, 80
    %v100 = vpop.permute.xlu0 %99
    %101 = vrot.lane.b32.xlu0 %v87, 80
    %v102 = vpop.permute.xlu0 %101
    %103 = vrot.lane.b32.xlu0 %v69, 80
    %v104 = vpop.permute.xlu0 %103
    %105 = vrot.lane.b32.xlu0 %v49, 80
    %v106 = vpop.permute.xlu0 %105
    %107 = vrot.lane.b32.xlu0 %v72, 80
    %v108 = vpop.permute.xlu0 %107
    %109 = vrot.lane.b32.xlu0 %v88, 80
    %v110 = vpop.permute.xlu0 %109
    %111 = vrot.lane.b32.xlu0 %v77, 80
    %v112 = vpop.permute.xlu0 %111
    %113 = vrot.lane.b32.xlu0 %v50, 80
    %v114 = vpop.permute.xlu0 %113
    %115 = vrot.lane.b32.xlu0 %v80, 80
    %v116 = vpop.permute.xlu0 %115
    %v117 = vld [vmem:[%s1] sm:$0xff]
    %v118 = vld [vmem:[%s1 + $0x8] sm:$0xff]
    %v119 = vld [vmem:[%s1 + $0x10] sm:$0xff]
    %v120 = vld [vmem:[%s1 + $0x18] sm:$0xff]
    %v121 = vld [vmem:[%s1 + $0x20] sm:$0xff]
    %v122 = vld [vmem:[%s1 + $0x28] sm:$0xff]
    %vm123 = vcmask 392192
    %v124 = vsel %vm123, %v47, 0
    %v126 = vsel %vm123, %v53, 0
    %v128 = vsel %vm123, %v55, 0
    %v130 = vsel %vm123, %v62, 0
    %v132 = vsel %vm123, %v48, 0
    %v134 = vsel %vm123, %v64, 0
    %v136 = vsel %vm123, %v66, 0
    %v138 = vsel %vm123, %v70, 0
    %v140 = vsel %vm123, %v49, 0
    %v142 = vsel %vm123, %v72, 0
    %v144 = vsel %vm123, %v74, 0
    %v146 = vsel %vm123, %v78, 0
    %v148 = vsel %vm123, %v50, 0
    %v150 = vsel %vm123, %v80, 0
    %v152 = vsel %vm123, %v82, 0
    %v154 = vsel %vm123, %v84, 0
    %v156 = vsel %vm123, %v90, 0
    %v158 = vsel %vm123, %v92, 0
    %v160 = vsel %vm123, %v94, 0
    %v162 = vsel %vm123, %v96, 0
    %v164 = vsel %vm123, %v98, 0
    %v166 = vsel %vm123, %v100, 0
    %v168 = vsel %vm123, %v102, 0
    %v170 = vsel %vm123, %v104, 0
    %v172 = vsel %vm123, %v106, 0
    %v174 = vsel %vm123, %v108, 0
    %v176 = vsel %vm123, %v110, 0
    %v178 = vsel %vm123, %v112, 0
    %v180 = vsel %vm123, %v114, 0
    %v182 = vsel %vm123, %v116, 0
    %184 = vmatprep.subr.mxu0 0.0
    %185 = vmatpush1.msra.mxu0 %v117
    %186 = vmatprep.subr.mxu0 0.0
    %187 = vmatpush1.msra.mxu0 %v118
    %188 = vmatprep.subr.mxu0 0.0
    %189 = vmatpush1.msra.mxu0 %v119
    %190 = vmatprep.subr.mxu0 0.0
    %191 = vmatpush1.msra.mxu0 %v120
    %192 = vmatprep.subr.mxu0 0.0
    %193 = vmatpush1.msra.mxu0 %v121
    %194 = vmatprep.subr.mxu0 0.0
    %195 = vmatpush1.msra.mxu0 %v122
    %196 = vmatprep.subr.mxu0 0.0
    %197 = vmatpush1.msra.mxu0 0.0
    %198 = vmatprep.subr.mxu0 0.0
    %199 = vmatpush1.msra.mxu0 0.0
    %200 = vmatprep.subr.mxu0 0.0
    %201 = vmatpush1.msra.mxu0 0.0
    %202 = vmatprep.subr.mxu0 0.0
    %203 = vmatpush1.msra.mxu0 0.0
    %204 = vmatprep.subr.mxu0 0.0
    %205 = vmatpush1.msra.mxu0 0.0
    %206 = vmatprep.subr.mxu0 0.0
    %207 = vmatpush1.msra.mxu0 0.0
    %208 = vmatprep.subr.mxu0 0.0
    %209 = vmatpush1.msra.mxu0 0.0
    %210 = vmatprep.subr.mxu0 0.0
    %211 = vmatpush1.msra.mxu0 0.0
    %212 = vmatprep.subr.mxu0 0.0
    %213 = vmatpush1.msra.mxu0 0.0
    %214 = vmatprep.subr.mxu0 0.0
    %215 = vmatpush1.msra.mxu0 0.0
    %216 = vmatprep.subr.mxu0 0.0
    %217 = vmatpush1.msra.mxu0 0.0
    %218 = vmatprep.subr.mxu0 0.0
    %219 = vmatpush1.msra.mxu0 0.0
    %220 = vmatprep.subr.mxu0 0.0
    %221 = vmatpush1.msra.mxu0 0.0
    %222 = vmatprep.subr.mxu0 0.0
    %223 = vmatpush1.msra.mxu0 0.0
    %224 = vmatprep.subr.mxu0 0.0
    %225 = vmatpush1.msra.mxu0 0.0
    %226 = vmatprep.subr.mxu0 0.0
    %227 = vmatpush1.msra.mxu0 0.0
    %228 = vmatprep.subr.mxu0 0.0
    %229 = vmatpush1.msra.mxu0 0.0
    %230 = vmatprep.subr.mxu0 0.0
    %231 = vmatpush1.msra.mxu0 0.0
    %232 = vmatprep.subr.mxu0 0.0
    %233 = vmatpush1.msra.mxu0 0.0
    %234 = vmatprep.subr.mxu0 0.0
    %235 = vmatpush1.msra.mxu0 0.0
    %236 = vmatprep.subr.mxu0 0.0
    %237 = vmatpush1.msra.mxu0 0.0
    %238 = vmatprep.subr.mxu0 0.0
    %239 = vmatpush1.msra.mxu0 0.0
    %240 = vmatprep.subr.mxu0 0.0
    %241 = vmatpush1.msra.mxu0 0.0
    %242 = vmatprep.subr.mxu0 0.0
    %243 = vmatpush1.msra.mxu0 0.0
    %244 = vmatprep.subr.mxu0 0.0
    %245 = vmatpush1.msra.mxu0 0.0
    %246 = vmatprep.subr.mxu0 0.0
    %247 = vmatpush1.msra.mxu0 0.0
    %248 = vmatprep.mubr.f32.mxu0 0.0
    %249 = vmatmul.mubr.f32.gmra.mrb[0].mxu0 %v124
    %v250 = vpop.f32.mrb[0].mxu0
    %v251 = vadd.f32 0.0, %v250
    %v252 = vpop.f32.mrb[0].mxu0
    %253 = vmatprep.mubr.f32.mxu0 0.0
    %254 = vmatmul.mubr.f32.gmra.mrb[0].mxu0 %v126
    %v255 = vpop.f32.mrb[0].mxu0
    %v256 = vadd.f32 0.0, %v255
    %v257 = vpop.f32.mrb[0].mxu0
    %258 = vmatprep.mubr.f32.mxu0 0.0
    %259 = vmatmul.mubr.f32.gmra.mrb[0].mxu0 %v128
    %v260 = vpop.f32.mrb[0].mxu0
    %v261 = vadd.f32 0.0, %v260
    %v262 = vpop.f32.mrb[0].mxu0
    %263 = vmatprep.mubr.f32.mxu0 0.0
    %264 = vmatmul.mubr.f32.gmra.mrb[0].mxu0 %v130
    %v265 = vpop.f32.mrb[0].mxu0
    %v266 = vadd.f32 0.0, %v265
    %v267 = vpop.f32.mrb[0].mxu0
    %268 = vmatprep.mubr.f32.mxu0 0.0
    %269 = vmatmul.mubr.f32.gmra.mrb[0].mxu0 %v132
    %v270 = vpop.f32.mrb[0].mxu0
    %v271 = vadd.f32 0.0, %v270
    %v272 = vpop.f32.mrb[0].mxu0
    %273 = vmatprep.mubr.f32.mxu0 0.0
    %274 = vmatmul.mubr.f32.gmra.mrb[0].mxu0 %v134
    %v275 = vpop.f32.mrb[0].mxu0
    %v276 = vadd.f32 0.0, %v275
    %v277 = vpop.f32.mrb[0].mxu0
    %278 = vmatprep.mubr.f32.mxu0 0.0
    %279 = vmatmul.mubr.f32.gmra.mrb[0].mxu0 %v136
    %v280 = vpop.f32.mrb[0].mxu0
    %v281 = vadd.f32 0.0, %v280
    %v282 = vpop.f32.mrb[0].mxu0
    %283 = vmatprep.mubr.f32.mxu0 0.0
    %284 = vmatmul.mubr.f32.gmra.mrb[0].mxu0 %v138
    %v285 = vpop.f32.mrb[0].mxu0
    %v286 = vadd.f32 0.0, %v285
    %v287 = vpop.f32.mrb[0].mxu0
    %288 = vmatprep.mubr.f32.mxu0 0.0
    %289 = vmatmul.mubr.f32.gmra.mrb[0].mxu0 %v140
    %v290 = vpop.f32.mrb[0].mxu0
    %v291 = vadd.f32 0.0, %v290
    %v292 = vpop.f32.mrb[0].mxu0
    %293 = vmatprep.mubr.f32.mxu0 0.0
    %294 = vmatmul.mubr.f32.gmra.mrb[0].mxu0 %v142
    %v295 = vpop.f32.mrb[0].mxu0
    %v296 = vadd.f32 0.0, %v295
    %v297 = vpop.f32.mrb[0].mxu0
    %298 = vmatprep.mubr.f32.mxu0 0.0
    %299 = vmatmul.mubr.f32.gmra.mrb[0].mxu0 %v144
    %v300 = vpop.f32.mrb[0].mxu0
    %v301 = vadd.f32 0.0, %v300
    %v302 = vpop.f32.mrb[0].mxu0
    %303 = vmatprep.mubr.f32.mxu0 0.0
    %304 = vmatmul.mubr.f32.gmra.mrb[0].mxu0 %v146
    %v305 = vpop.f32.mrb[0].mxu0
    %v306 = vadd.f32 0.0, %v305
    %v307 = vpop.f32.mrb[0].mxu0
    %308 = vmatprep.mubr.f32.mxu0 0.0
    %309 = vmatmul.mubr.f32.gmra.mrb[0].mxu0 %v148
    %v310 = vpop.f32.mrb[0].mxu0
    %v311 = vadd.f32 0.0, %v310
    %v312 = vpop.f32.mrb[0].mxu0
    %313 = vmatprep.mubr.f32.mxu0 0.0
    %314 = vmatmul.mubr.f32.gmra.mrb[0].mxu0 %v150
    %v315 = vpop.f32.mrb[0].mxu0
    %v316 = vadd.f32 0.0, %v315
    %v317 = vpop.f32.mrb[0].mxu0
    %318 = vmatprep.mubr.f32.mxu0 0.0
    %319 = vmatmul.mubr.f32.gmra.mrb[0].mxu0 %v152
    %v320 = vpop.f32.mrb[0].mxu0
    %v321 = vpop.f32.mrb[0].mxu0
    %322 = vmatprep.mubr.f32.mxu0 0.0
    %323 = vmatmul.mubr.f32.gmra.mrb[0].mxu0 %v154
    %v324 = vpop.f32.mrb[0].mxu0
    %v325 = vadd.f32 0.0, %v324
    %v326 = vpop.f32.mrb[0].mxu0
    %327 = vmatprep.mubr.f32.mxu0 0.0
    %328 = vmatmul.mubr.f32.gmra.mrb[0].mxu0 %v156
    %v329 = vpop.f32.mrb[0].mxu0
    %v330 = vadd.f32 0.0, %v329
    %v331 = vpop.f32.mrb[0].mxu0
    %332 = vmatprep.mubr.f32.mxu0 0.0
    %333 = vmatmul.mubr.f32.gmra.mrb[0].mxu0 %v158
    %v334 = vpop.f32.mrb[0].mxu0
    %v335 = vadd.f32 0.0, %v334
    %v336 = vpop.f32.mrb[0].mxu0
    %337 = vmatprep.mubr.f32.mxu0 0.0
    %338 = vmatmul.mubr.f32.gmra.mrb[0].mxu0 %v160
    %v339 = vpop.f32.mrb[0].mxu0
    %v340 = vadd.f32 0.0, %v339
    %v341 = vpop.f32.mrb[0].mxu0
    %342 = vmatprep.mubr.f32.mxu0 0.0
    %343 = vmatmul.mubr.f32.gmra.mrb[0].mxu0 %v162
    %v344 = vpop.f32.mrb[0].mxu0
    %v345 = vadd.f32 0.0, %v344
    %v346 = vpop.f32.mrb[0].mxu0
    %347 = vmatprep.mubr.f32.mxu0 0.0
    %348 = vmatmul.mubr.f32.gmra.mrb[0].mxu0 %v164
    %v349 = vpop.f32.mrb[0].mxu0
    %v350 = vadd.f32 0.0, %v349
    %v351 = vpop.f32.mrb[0].mxu0
    %352 = vmatprep.mubr.f32.mxu0 0.0
    %353 = vmatmul.mubr.f32.gmra.mrb[0].mxu0 %v166
    %v354 = vpop.f32.mrb[0].mxu0
    %v355 = vadd.f32 0.0, %v354
    %v356 = vpop.f32.mrb[0].mxu0
    %357 = vmatprep.mubr.f32.mxu0 0.0
    %358 = vmatmul.mubr.f32.gmra.mrb[0].mxu0 %v168
    %v359 = vpop.f32.mrb[0].mxu0
    %v360 = vadd.f32 0.0, %v359
    %v361 = vpop.f32.mrb[0].mxu0
    %362 = vmatprep.mubr.f32.mxu0 0.0
    %363 = vmatmul.mubr.f32.gmra.mrb[0].mxu0 %v170
    %v364 = vpop.f32.mrb[0].mxu0
    %v365 = vadd.f32 0.0, %v364
    %v366 = vpop.f32.mrb[0].mxu0
    %367 = vmatprep.mubr.f32.mxu0 0.0
    %368 = vmatmul.mubr.f32.gmra.mrb[0].mxu0 %v172
    %v369 = vpop.f32.mrb[0].mxu0
    %v370 = vadd.f32 0.0, %v369
    %v371 = vpop.f32.mrb[0].mxu0
    %372 = vmatprep.mubr.f32.mxu0 0.0
    %373 = vmatmul.mubr.f32.gmra.mrb[0].mxu0 %v174
    %v374 = vpop.f32.mrb[0].mxu0
    %v375 = vadd.f32 0.0, %v374
    %v376 = vpop.f32.mrb[0].mxu0
    %377 = vmatprep.mubr.f32.mxu0 0.0
    %378 = vmatmul.mubr.f32.gmra.mrb[0].mxu0 %v176
    %v379 = vpop.f32.mrb[0].mxu0
    %v380 = vadd.f32 0.0, %v379
    %v381 = vpop.f32.mrb[0].mxu0
    %382 = vmatprep.mubr.f32.mxu0 0.0
    %383 = vmatmul.mubr.f32.gmra.mrb[0].mxu0 %v178
    %v384 = vpop.f32.mrb[0].mxu0
    %v385 = vadd.f32 0.0, %v384
    %v386 = vpop.f32.mrb[0].mxu0
    %387 = vmatprep.mubr.f32.mxu0 0.0
    %388 = vmatmul.mubr.f32.gmra.mrb[0].mxu0 %v180
    %v389 = vpop.f32.mrb[0].mxu0
    %v390 = vadd.f32 0.0, %v389
    %v391 = vpop.f32.mrb[0].mxu0
    %392 = vmatprep.mubr.f32.mxu0 0.0
    %393 = vmatmul.mubr.f32.gmra.mrb[0].mxu0 %v182
    %v394 = vpop.f32.mrb[0].mxu0
    %v395 = vpop.f32.mrb[0].mxu0
    %396 = vdwg.mxu0
    %v397 = vmax.f32 %v251, %v325
    %v398 = vmax.f32 %v256, %v330
    %v399 = vmax.f32 %v261, %v335
    %v400 = vmax.f32 %v266, %v340
    %v401 = vmax.f32 %v271, %v345
    %v402 = vmax.f32 %v276, %v350
    %v403 = vmax.f32 %v281, %v355
    %v404 = vmax.f32 %v286, %v360
    %v405 = vmax.f32 %v291, %v365
    %v406 = vmax.f32 %v296, %v370
    %v407 = vmax.f32 %v301, %v375
    %v408 = vmax.f32 %v306, %v380
    %v409 = vmax.f32 %v311, %v385
    %v410 = vmax.f32 %v316, %v390
    %v411 = vld [vmem:[%s2] sm:$0x1]
    %v413 = vlaneseq
    %v414 = vshrl.u32 %v413, 7
    %v415 = vsub.s32 0, %v414
    %v416 = vrot.slane %v411, %v415
    %v418 = vadd.f32 %v397, %v416
    %v419 = vadd.f32 %v398, %v416
    %v420 = vadd.f32 %v399, %v416
    %v421 = vadd.f32 %v400, %v416
    %v422 = vadd.f32 %v401, %v416
    %v423 = vadd.f32 %v402, %v416
    %v424 = vadd.f32 %v403, %v416
    %v425 = vadd.f32 %v404, %v416
    %v426 = vadd.f32 %v405, %v416
    %v427 = vadd.f32 %v406, %v416
    %v428 = vadd.f32 %v407, %v416
    %v429 = vadd.f32 %v408, %v416
    %v430 = vadd.f32 %v409, %v416
    %v431 = vadd.f32 %v410, %v416
    %v432 = vtanh.pop %v418
    %v433 = vtanh.pop %v419
    %v434 = vtanh.pop %v420
    %v435 = vtanh.pop %v421
    %v436 = vtanh.pop %v422
    %v437 = vtanh.pop %v423
    %v438 = vtanh.pop %v424
    %v439 = vtanh.pop %v425
    %v440 = vtanh.pop %v426
    %v441 = vtanh.pop %v427
    %v442 = vtanh.pop %v428
    %v443 = vtanh.pop %v429
    %v444 = vtanh.pop %v430
    %v445 = vtanh.pop %v431
    %447 = vrot.lane.b32.xlu0 %v433, 64
    %v448 = vpop.permute.xlu0 %447
    %v450 = vsel %vm85, %v432, %v448
    %452 = vrot.lane.b32.xlu0 %v435, 64
    %v453 = vpop.permute.xlu0 %452
    %v455 = vsel %vm85, %v434, %v453
    %457 = vrot.lane.b32.xlu0 %v437, 64
    %v458 = vpop.permute.xlu0 %457
    %v460 = vsel %vm85, %v436, %v458
    %462 = vrot.lane.b32.xlu0 %v439, 64
    %v463 = vpop.permute.xlu0 %462
    %v465 = vsel %vm85, %v438, %v463
    %467 = vrot.lane.b32.xlu0 %v441, 64
    %v468 = vpop.permute.xlu0 %467
    %v470 = vsel %vm85, %v440, %v468
    %472 = vrot.lane.b32.xlu0 %v443, 64
    %v473 = vpop.permute.xlu0 %472
    %v475 = vsel %vm85, %v442, %v473
    %477 = vrot.lane.b32.xlu0 %v434, 64
    %v478 = vpop.permute.xlu0 %477
    %v480 = vsel %vm85, %v433, %v478
    %482 = vrot.lane.b32.xlu0 %v436, 64
    %v483 = vpop.permute.xlu0 %482
    %v485 = vsel %vm85, %v435, %v483
    %487 = vrot.lane.b32.xlu0 %v438, 64
    %v488 = vpop.permute.xlu0 %487
    %v490 = vsel %vm85, %v437, %v488
    %492 = vrot.lane.b32.xlu0 %v440, 64
    %v493 = vpop.permute.xlu0 %492
    %v495 = vsel %vm85, %v439, %v493
    %497 = vrot.lane.b32.xlu0 %v442, 64
    %v498 = vpop.permute.xlu0 %497
    %v500 = vsel %vm85, %v441, %v498
    %502 = vrot.lane.b32.xlu0 %v444, 64
    %v503 = vpop.permute.xlu0 %502
    %v505 = vsel %vm85, %v443, %v503
    %v506 = vld [vmem:[%s3] sm:$0xff]
    %v507 = vld [vmem:[%s3 + $0x8] sm:$0xff]
    %v508 = vld [vmem:[%s3 + $0x10] sm:$0xff]
    %v509 = vld [vmem:[%s3 + $0x18] sm:$0xff]
    %v510 = vld [vmem:[%s3 + $0x20] sm:$0xff]
    %v511 = vld [vmem:[%s3 + $0x28] sm:$0xff]
    %v512 = vld [vmem:[%s3 + $0x30] sm:$0xff]
    %v513 = vld [vmem:[%s3 + $0x38] sm:$0xff]
    %v514 = vld [vmem:[%s3 + $0x40] sm:$0xff]
    %v515 = vld [vmem:[%s3 + $0x48] sm:$0xff]
    %v516 = vld [vmem:[%s3 + $0x50] sm:$0xff]
    %v517 = vld [vmem:[%s3 + $0x58] sm:$0xff]
    %v518 = vld [vmem:[%s3 + $0x60] sm:$0xff]
    %v519 = vld [vmem:[%s3 + $0x68] sm:$0xff]
    %v520 = vld [vmem:[%s3 + $0x70] sm:$0xff]
    %v521 = vld [vmem:[%s3 + $0x78] sm:$0xff]
    %v522 = vld [vmem:[%s3 + $0x80] sm:$0xff]
    %v523 = vld [vmem:[%s3 + $0x88] sm:$0xff]
    %v524 = vld [vmem:[%s3 + $0x90] sm:$0xff]
    %v525 = vld [vmem:[%s3 + $0x98] sm:$0xff]
    %v526 = vld [vmem:[%s3 + $0xa0] sm:$0xff]
    %v527 = vld [vmem:[%s3 + $0xa8] sm:$0xff]
    %v528 = vld [vmem:[%s3 + $0xb0] sm:$0xff]
    %v529 = vld [vmem:[%s3 + $0xb8] sm:$0xff]
    %v530 = vsel %vm85, %v434, 0
    %v532 = vsel %vm85, %v436, 0
    %v534 = vsel %vm85, %v438, 0
    %v536 = vsel %vm85, %v440, 0
    %v538 = vsel %vm85, %v442, 0
    %v540 = vsel %vm85, %v444, 0
    %v542 = vsel %vm85, %v435, 0
    %v544 = vsel %vm85, %v437, 0
    %v546 = vsel %vm85, %v439, 0
    %v548 = vsel %vm85, %v441, 0
    %v550 = vsel %vm85, %v443, 0
    %v553 = vsel %vm85, %v445, 0
    %555 = vmatprep.subr.mxu0 0.0
    %556 = vmatpush1.msra.mxu0 %v506
    %557 = vmatprep.subr.mxu0 0.0
    %558 = vmatpush1.msra.mxu0 %v507
    %559 = vmatprep.subr.mxu0 0.0
    %560 = vmatpush1.msra.mxu0 %v508
    %561 = vmatprep.subr.mxu0 0.0
    %562 = vmatpush1.msra.mxu0 %v509
    %563 = vmatprep.subr.mxu0 0.0
    %564 = vmatpush1.msra.mxu0 %v510
    %565 = vmatprep.subr.mxu0 0.0
    %566 = vmatpush1.msra.mxu0 %v511
    %567 = vmatprep.subr.mxu0 0.0
    %568 = vmatpush1.msra.mxu0 %v512
    %569 = vmatprep.subr.mxu0 0.0
    %570 = vmatpush1.msra.mxu0 %v513
    %571 = vmatprep.subr.mxu0 0.0
    %572 = vmatpush1.msra.mxu0 %v514
    %573 = vmatprep.subr.mxu0 0.0
    %574 = vmatpush1.msra.mxu0 %v515
    %575 = vmatprep.subr.mxu0 0.0
    %576 = vmatpush1.msra.mxu0 %v516
    %577 = vmatprep.subr.mxu0 0.0
    %578 = vmatpush1.msra.mxu0 %v517
    %579 = vmatprep.subr.mxu0 0.0
    %580 = vmatpush1.msra.mxu0 %v518
    %581 = vmatprep.subr.mxu0 0.0
    %582 = vmatpush1.msra.mxu0 %v519
    %583 = vmatprep.subr.mxu0 0.0
    %584 = vmatpush1.msra.mxu0 %v520
    %585 = vmatprep.subr.mxu0 0.0
    %586 = vmatpush1.msra.mxu0 %v521
    %587 = vmatprep.subr.mxu0 0.0
    %588 = vmatpush1.msra.mxu0 %v522
    %589 = vmatprep.subr.mxu0 0.0
    %590 = vmatpush1.msra.mxu0 %v523
    %591 = vmatprep.subr.mxu0 0.0
    %592 = vmatpush1.msra.mxu0 %v524
    %593 = vmatprep.subr.mxu0 0.0
    %594 = vmatpush1.msra.mxu0 %v525
    %595 = vmatprep.subr.mxu0 0.0
    %596 = vmatpush1.msra.mxu0 %v526
    %597 = vmatprep.subr.mxu0 0.0
    %598 = vmatpush1.msra.mxu0 %v527
    %599 = vmatprep.subr.mxu0 0.0
    %600 = vmatpush1.msra.mxu0 %v528
    %601 = vmatprep.subr.mxu0 0.0
    %602 = vmatpush1.msra.mxu0 %v529
    %603 = vmatprep.subr.mxu0 0.0
    %604 = vmatpush1.msra.mxu0 0.0
    %605 = vmatprep.subr.mxu0 0.0
    %606 = vmatpush1.msra.mxu0 0.0
    %607 = vmatprep.subr.mxu0 0.0
    %608 = vmatpush1.msra.mxu0 0.0
    %609 = vmatprep.subr.mxu0 0.0
    %610 = vmatpush1.msra.mxu0 0.0
    %611 = vmatprep.subr.mxu0 0.0
    %612 = vmatpush1.msra.mxu0 0.0
    %613 = vmatprep.subr.mxu0 0.0
    %614 = vmatpush1.msra.mxu0 0.0
    %615 = vmatprep.subr.mxu0 0.0
    %616 = vmatpush1.msra.mxu0 0.0
    %617 = vmatprep.subr.mxu0 0.0
    %618 = vmatpush1.msra.mxu0 0.0
    %619 = vmatprep.mubr.f32.mxu0 %v530
    %620 = vmatmul.mubr.f32.gmra.mrb[0].mxu0 %v450
    %v621 = vpop.f32.mrb[0].mxu0
    %v622 = vadd.f32 0.0, %v621
    %v623 = vpop.f32.mrb[0].mxu0
    %624 = vmatprep.mubr.f32.mxu0 %v532
    %625 = vmatmul.mubr.f32.gmra.mrb[0].mxu0 %v455
    %v626 = vpop.f32.mrb[0].mxu0
    %v627 = vadd.f32 0.0, %v626
    %v628 = vpop.f32.mrb[0].mxu0
    %629 = vmatprep.mubr.f32.mxu0 %v534
    %630 = vmatmul.mubr.f32.gmra.mrb[0].mxu0 %v460
    %v631 = vpop.f32.mrb[0].mxu0
    %v632 = vadd.f32 0.0, %v631
    %v633 = vpop.f32.mrb[0].mxu0
    %634 = vmatprep.mubr.f32.mxu0 %v536
    %635 = vmatmul.mubr.f32.gmra.mrb[0].mxu0 %v465
    %v636 = vpop.f32.mrb[0].mxu0
    %v637 = vadd.f32 0.0, %v636
    %v638 = vpop.f32.mrb[0].mxu0
    %639 = vmatprep.mubr.f32.mxu0 %v538
    %640 = vmatmul.mubr.f32.gmra.mrb[0].mxu0 %v470
    %v641 = vpop.f32.mrb[0].mxu0
    %v642 = vadd.f32 0.0, %v641
    %v643 = vpop.f32.mrb[0].mxu0
    %644 = vmatprep.mubr.f32.mxu0 %v540
    %645 = vmatmul.mubr.f32.gmra.mrb[0].mxu0 %v475
    %v646 = vpop.f32.mrb[0].mxu0
    %v647 = vadd.f32 0.0, %v646
    %v648 = vpop.f32.mrb[0].mxu0
    %649 = vmatprep.mubr.f32.mxu0 %v542
    %650 = vmatmul.mubr.f32.gmra.mrb[0].mxu0 %v480
    %v651 = vpop.f32.mrb[0].mxu0
    %v652 = vadd.f32 0.0, %v651
    %v653 = vpop.f32.mrb[0].mxu0
    %654 = vmatprep.mubr.f32.mxu0 %v544
    %655 = vmatmul.mubr.f32.gmra.mrb[0].mxu0 %v485
    %v656 = vpop.f32.mrb[0].mxu0
    %v657 = vadd.f32 0.0, %v656
    %v658 = vpop.f32.mrb[0].mxu0
    %659 = vmatprep.mubr.f32.mxu0 %v546
    %660 = vmatmul.mubr.f32.gmra.mrb[0].mxu0 %v490
    %v661 = vpop.f32.mrb[0].mxu0
    %v662 = vadd.f32 0.0, %v661
    %v663 = vpop.f32.mrb[0].mxu0
    %664 = vmatprep.mubr.f32.mxu0 %v548
    %665 = vmatmul.mubr.f32.gmra.mrb[0].mxu0 %v495
    %v666 = vpop.f32.mrb[0].mxu0
    %v667 = vadd.f32 0.0, %v666
    %v668 = vpop.f32.mrb[0].mxu0
    %669 = vmatprep.mubr.f32.mxu0 %v550
    %670 = vmatmul.mubr.f32.gmra.mrb[0].mxu0 %v500
    %v671 = vpop.f32.mrb[0].mxu0
    %v672 = vadd.f32 0.0, %v671
    %v673 = vpop.f32.mrb[0].mxu0
    %674 = vmatprep.mubr.f32.mxu0 %v553
    %675 = vmatmul.mubr.f32.gmra.mrb[0].mxu0 %v505
    %v676 = vpop.f32.mrb[0].mxu0
    %v677 = vadd.f32 0.0, %v676
    %v678 = vpop.f32.mrb[0].mxu0
    %679 = vdwg.mxu0
    %v680 = vmax.f32 %v622, %v652
    %v681 = vmax.f32 %v627, %v657
    %v682 = vmax.f32 %v632, %v662
    %v683 = vmax.f32 %v637, %v667
    %v684 = vmax.f32 %v642, %v672
    %v685 = vmax.f32 %v647, %v677
    %v686 = vld [vmem:[%s4] sm:$0x1]
    %v688 = vlaneseq
    %v689 = vshrl.u32 %v688, 7
    %v690 = vsub.s32 0, %v689
    %v691 = vrot.slane %v686, %v690
    %v693 = vadd.f32 %v680, %v691
    %v694 = vadd.f32 %v681, %v691
    %v695 = vadd.f32 %v682, %v691
    %v696 = vadd.f32 %v683, %v691
    %v697 = vadd.f32 %v684, %v691
    %v698 = vadd.f32 %v685, %v691
    %v699 = vtanh.pop %v693
    %v700 = vtanh.pop %v694
    %v701 = vtanh.pop %v695
    %v702 = vtanh.pop %v696
    %v703 = vtanh.pop %v697
    %v704 = vtanh.pop %v698
    %706 = vrot.lane.b32.xlu0 %v700, 32
    %v707 = vpop.permute.xlu0 %706
    %710 = vrot.lane.b32.xlu0 %v701, 64
    %v711 = vpop.permute.xlu0 %710
    %714 = vrot.lane.b32.xlu0 %v702, 96
    %v715 = vpop.permute.xlu0 %714
    %718 = vrot.lane.b32.xlu0 %v704, 32
    %v719 = vpop.permute.xlu0 %718
    %v721 = vsel %vm61, %v699, %v707
    %v722 = vsel %vm85, %v721, %v711
    %vm723 = vcmask 785408
    %v724 = vsel %vm723, %v722, %v715
    %v725 = vsel %vm61, %v703, %v719
    %v726 = vld [vmem:[%s5] sm:$0xff]
    %v727 = vld [vmem:[%s5 + $0x8] sm:$0xff]
    %v728 = vld [vmem:[%s5 + $0x10] sm:$0xff]
    %v729 = vld [vmem:[%s5 + $0x18] sm:$0xff]
    %v730 = vld [vmem:[%s5 + $0x20] sm:$0xff]
    %v731 = vld [vmem:[%s5 + $0x28] sm:$0xff]
    %v732 = vld [vmem:[%s5 + $0x30] sm:$0xff]
    %v733 = vld [vmem:[%s5 + $0x38] sm:$0xff]
    %v734 = vld [vmem:[%s5 + $0x40] sm:$0xff]
    %v735 = vld [vmem:[%s5 + $0x48] sm:$0xff]
    %v736 = vld [vmem:[%s5 + $0x50] sm:$0xff]
    %v737 = vld [vmem:[%s5 + $0x58] sm:$0xff]
    %v738 = vld [vmem:[%s5 + $0x60] sm:$0xff]
    %v739 = vld [vmem:[%s5 + $0x68] sm:$0xff]
    %v740 = vld [vmem:[%s5 + $0x70] sm:$0xff]
    %v741 = vld [vmem:[%s5 + $0x78] sm:$0xff]
    %v742 = vld [vmem:[%s5 + $0x80] sm:$0xff]
    %v743 = vld [vmem:[%s5 + $0x88] sm:$0xff]
    %v744 = vld [vmem:[%s5 + $0x90] sm:$0xff]
    %v745 = vld [vmem:[%s5 + $0x98] sm:$0xff]
    %v746 = vld [vmem:[%s5 + $0xa0] sm:$0xff]
    %v747 = vld [vmem:[%s5 + $0xa8] sm:$0xff]
    %v748 = vld [vmem:[%s5 + $0xb0] sm:$0xff]
    %v749 = vld [vmem:[%s5 + $0xb8] sm:$0xff]
    %v750 = vld [vmem:[%s6] sm:$0x1]
    %v752 = vlaneseq
    %v753 = vshrl.u32 %v752, 7
    %v754 = vsub.s32 0, %v753
    %v755 = vrot.slane %v750, %v754
    %v758 = vsel %vm85, %v725, 0
    %760 = vmatprep.subr.mxu0 0.0
    %761 = vmatpush1.msra.mxu0 %v726
    %762 = vmatprep.subr.mxu0 0.0
    %763 = vmatpush1.msra.mxu0 %v727
    %764 = vmatprep.subr.mxu0 0.0
    %765 = vmatpush1.msra.mxu0 %v728
    %766 = vmatprep.subr.mxu0 0.0
    %767 = vmatpush1.msra.mxu0 %v729
    %768 = vmatprep.subr.mxu0 0.0
    %769 = vmatpush1.msra.mxu0 %v730
    %770 = vmatprep.subr.mxu0 0.0
    %771 = vmatpush1.msra.mxu0 %v731
    %772 = vmatprep.subr.mxu0 0.0
    %773 = vmatpush1.msra.mxu0 %v732
    %774 = vmatprep.subr.mxu0 0.0
    %775 = vmatpush1.msra.mxu0 %v733
    %776 = vmatprep.subr.mxu0 0.0
    %777 = vmatpush1.msra.mxu0 %v734
    %778 = vmatprep.subr.mxu0 0.0
    %779 = vmatpush1.msra.mxu0 %v735
    %780 = vmatprep.subr.mxu0 0.0
    %781 = vmatpush1.msra.mxu0 %v736
    %782 = vmatprep.subr.mxu0 0.0
    %783 = vmatpush1.msra.mxu0 %v737
    %784 = vmatprep.subr.mxu0 0.0
    %785 = vmatpush1.msra.mxu0 %v738
    %786 = vmatprep.subr.mxu0 0.0
    %787 = vmatpush1.msra.mxu0 %v739
    %788 = vmatprep.subr.mxu0 0.0
    %789 = vmatpush1.msra.mxu0 %v740
    %790 = vmatprep.subr.mxu0 0.0
    %791 = vmatpush1.msra.mxu0 %v741
    %792 = vmatprep.subr.mxu0 0.0
    %793 = vmatpush1.msra.mxu0 %v742
    %794 = vmatprep.subr.mxu0 0.0
    %795 = vmatpush1.msra.mxu0 %v743
    %796 = vmatprep.subr.mxu0 0.0
    %797 = vmatpush1.msra.mxu0 %v744
    %798 = vmatprep.subr.mxu0 0.0
    %799 = vmatpush1.msra.mxu0 %v745
    %800 = vmatprep.subr.mxu0 0.0
    %801 = vmatpush1.msra.mxu0 %v746
    %802 = vmatprep.subr.mxu0 0.0
    %803 = vmatpush1.msra.mxu0 %v747
    %804 = vmatprep.subr.mxu0 0.0
    %805 = vmatpush1.msra.mxu0 %v748
    %806 = vmatprep.subr.mxu0 0.0
    %807 = vmatpush1.msra.mxu0 %v749
    %808 = vmatprep.subr.mxu0 0.0
    %809 = vmatpush1.msra.mxu0 0.0
    %810 = vmatprep.subr.mxu0 0.0
    %811 = vmatpush1.msra.mxu0 0.0
    %812 = vmatprep.subr.mxu0 0.0
    %813 = vmatpush1.msra.mxu0 0.0
    %814 = vmatprep.subr.mxu0 0.0
    %815 = vmatpush1.msra.mxu0 0.0
    %816 = vmatprep.subr.mxu0 0.0
    %817 = vmatpush1.msra.mxu0 0.0
    %818 = vmatprep.subr.mxu0 0.0
    %819 = vmatpush1.msra.mxu0 0.0
    %820 = vmatprep.subr.mxu0 0.0
    %821 = vmatpush1.msra.mxu0 0.0
    %822 = vmatprep.subr.mxu0 0.0
    %823 = vmatpush1.msra.mxu0 0.0
    %824 = vmatprep.mubr.f32.mxu0 %v758
    %825 = vmatmul.mubr.f32.gmra.mrb[0].mxu0 %v724
    %v826 = vpop.f32.mrb[0].mxu0
    %v827 = vadd.f32 %v755, %v826
    %v828 = vpop.f32.mrb[0].mxu0
    %829 = vdwg.mxu0
    %v830 = vtanh.pop %v827
    %v831 = vld [vmem:[#allocation2] sm:$0xff]
    %v832 = vld [vmem:[#allocation2 + $0x8] sm:$0xff]
    %v833 = vld [vmem:[#allocation2 + $0x10] sm:$0xff]
    %v834 = vld [vmem:[#allocation2 + $0x18] sm:$0xff]
    %v835 = vld [vmem:[#allocation2 + $0x20] sm:$0xff]
    %v836 = vld [vmem:[#allocation2 + $0x28] sm:$0xff]
    %v837 = vld [vmem:[#allocation2 + $0x30] sm:$0xff]
    %v838 = vld [vmem:[#allocation2 + $0x38] sm:$0xff]
    %v839 = vld [vmem:[#allocation2 + $0x40] sm:$0xff]
    %v840 = vld [vmem:[#allocation2 + $0x48] sm:$0xff]
    %v841 = vld [vmem:[#allocation2 + $0x50] sm:$0xff]
    %v842 = vld [vmem:[#allocation2 + $0x58] sm:$0xff]
    %v843 = vld [vmem:[#allocation2 + $0x60] sm:$0xf]
    %v844 = vld [vmem:[%s8] sm:$0x1]
    %v846 = vlaneseq
    %v847 = vshrl.u32 %v846, 7
    %v848 = vsub.s32 0, %v847
    %v849 = vrot.slane %v844, %v848
    %vm851 = vcmask 818176
    %v853 = vsel %vm851, %v830, 0
    %vm855 = vcmask 1043456
    %v857 = vsel %vm855, %v843, 0
    %859 = vmatprep.subr.mxu0 0.0
    %860 = vmatpush1.msra.mxu0 %v831
    %861 = vmatprep.subr.mxu0 0.0
    %862 = vmatpush1.msra.mxu0 %v832
    %863 = vmatprep.subr.mxu0 0.0
    %864 = vmatpush1.msra.mxu0 %v833
    %865 = vmatprep.subr.mxu0 0.0
    %866 = vmatpush1.msra.mxu0 %v834
    %867 = vmatprep.subr.mxu0 0.0
    %868 = vmatpush1.msra.mxu0 %v835
    %869 = vmatprep.subr.mxu0 0.0
    %870 = vmatpush1.msra.mxu0 %v836
    %871 = vmatprep.subr.mxu0 0.0
    %872 = vmatpush1.msra.mxu0 %v837
    %873 = vmatprep.subr.mxu0 0.0
    %874 = vmatpush1.msra.mxu0 %v838
    %875 = vmatprep.subr.mxu0 0.0
    %876 = vmatpush1.msra.mxu0 %v839
    %877 = vmatprep.subr.mxu0 0.0
    %878 = vmatpush1.msra.mxu0 %v840
    %879 = vmatprep.subr.mxu0 0.0
    %880 = vmatpush1.msra.mxu0 %v841
    %881 = vmatprep.subr.mxu0 0.0
    %882 = vmatpush1.msra.mxu0 %v842
    %883 = vmatprep.subr.mxu0 0.0
    %884 = vmatpush1.msra.mxu0 %v857
    %885 = vmatprep.subr.mxu0 0.0
    %886 = vmatpush1.msra.mxu0 0.0
    %887 = vmatprep.subr.mxu0 0.0
    %888 = vmatpush1.msra.mxu0 0.0
    %889 = vmatprep.subr.mxu0 0.0
    %890 = vmatpush1.msra.mxu0 0.0
    %891 = vmatprep.subr.mxu0 0.0
    %892 = vmatpush1.msra.mxu0 0.0
    %893 = vmatprep.subr.mxu0 0.0
    %894 = vmatpush1.msra.mxu0 0.0
    %895 = vmatprep.subr.mxu0 0.0
    %896 = vmatpush1.msra.mxu0 0.0
    %897 = vmatprep.subr.mxu0 0.0
    %898 = vmatpush1.msra.mxu0 0.0
    %899 = vmatprep.subr.mxu0 0.0
    %900 = vmatpush1.msra.mxu0 0.0
    %901 = vmatprep.subr.mxu0 0.0
    %902 = vmatpush1.msra.mxu0 0.0
    %903 = vmatprep.subr.mxu0 0.0
    %904 = vmatpush1.msra.mxu0 0.0
    %905 = vmatprep.subr.mxu0 0.0
    %906 = vmatpush1.msra.mxu0 0.0
    %907 = vmatprep.subr.mxu0 0.0
    %908 = vmatpush1.msra.mxu0 0.0
    %909 = vmatprep.subr.mxu0 0.0
    %910 = vmatpush1.msra.mxu0 0.0
    %911 = vmatprep.subr.mxu0 0.0
    %912 = vmatpush1.msra.mxu0 0.0
    %913 = vmatprep.subr.mxu0 0.0
    %914 = vmatpush1.msra.mxu0 0.0
    %915 = vmatprep.subr.mxu0 0.0
    %916 = vmatpush1.msra.mxu0 0.0
    %917 = vmatprep.subr.mxu0 0.0
    %918 = vmatpush1.msra.mxu0 0.0
    %919 = vmatprep.subr.mxu0 0.0
    %920 = vmatpush1.msra.mxu0 0.0
    %921 = vmatprep.subr.mxu0 0.0
    %922 = vmatpush1.msra.mxu0 0.0
    %923 = vmatprep.mubr.f32.mxu0 0.0
    %924 = vmatmul.mubr.f32.gmra.mrb[0].mxu0 %v853
    %v925 = vpop.f32.mrb[0].mxu0
    %v926 = vadd.f32 %v849, %v925
    %v927 = vpop.f32.mrb[0].mxu0
    %928 = vdwg.mxu0
    %929 = vmax.xlane.f32.xlu0 %v926
    %v930 = vpop.xlane.xlu0 %929
    %v931 = vsub.f32 %v926, %v930
    %v932 = vmul.f32 %v931, 1.442695
    %v933 = vpow.pop %v932
    %934 = vadd.xlane.f32.xlu0 %v933
    %v935 = vpop.xlane.xlu0 %934
    %v936 = vrcp.pop %v935
    %v937 = vmul.f32 %v933, %v936
    %938 = vst [vmem:[#allocation5] sm:$0xff] %v937
    // Predicated region
    $region42: #{tpu_custom_call.1} parent=1 // pred_check
      _
    $region43: #{tpu_custom_call.1} parent=1 // pred_check_branch
      %940 = sbr.rel (0) target = $region45
    $region44: #{tpu_custom_call.1} parent=1 // pred_region
      %s942 = ssub.s32 128, 128
      %943 = vsyncadd [#allocation4], %s942
      %s945 = sshll.u32 [#allocation5], 4
      %s946 = int_to_ptr.vmem [resolvable:$true] %s945
      %948 = dma.vmem_to_hbm [thread:$0]  %s946, 128, %s9, [#allocation4]
    $region45: #{tpu_custom_call.1} parent=1 // pred_fallthru
      _
    // Predicated region
    $region46: #{tpu_custom_call.1} parent=1 // pred_check
      _
    $region47: #{tpu_custom_call.1} parent=1 // pred_check_branch
      %950 = sbr.rel (0) target = $region49
    $region48: #{tpu_custom_call.1} parent=1 // pred_region
      %951 = dma.done [#allocation4], 128
    $region49: #{tpu_custom_call.1} parent=1 // pred_fallthru
      _
    %952 = vsyncpa [#allocation3], 1
    %953 = vsyncpa [#allocation4], 1

</llo_original>
